<compile_context>
chip_gen: v6e
topology: v6e:2x2x1
jax: 0.10.0
libtpu: 0.0.40
codegen_flags: <defaults>
</compile_context>

<pallas_src>
import functools

import jax
import jax.numpy as jnp
from jax import lax
from jax.experimental import pallas as pl
from jax.experimental.pallas import tpu as pltpu


# ---------------------------------------------------------------------------
# In-kernel helpers
# ---------------------------------------------------------------------------
def _band_matrix(n: int, pad: int):
    """(n, n) f32 matrix with band[i, j] = 1 iff |i - j| <= pad."""
    r = lax.broadcasted_iota(jnp.int32, (n, n), 0)
    c = lax.broadcasted_iota(jnp.int32, (n, n), 1)
    return (jnp.abs(r - c) <= pad).astype(jnp.float32)


def _mask_block_from_bits(rbits, *, threshold: int, pad: int):
    """mask_block = 1 - max_pool2d(bernoulli(gamma), k, stride=1, pad=k//2).

    rbits: (tb, H, W) int32, uniform in [0, 2^24).
    The max-pool of a {0,1} mask is computed as window *counts* with two banded
    matmuls (counts <= block_size^2, exact in f32), then thresholded.  Counts
    are kept in f32 so the kernel is also exact on v5e (no bf16 VPU there).
    """
    tb, H, W = rbits.shape
    m = (rbits < threshold).astype(jnp.float32)              # bernoulli(gamma)

    band_w = jnp.broadcast_to(_band_matrix(W, pad), (tb, W, W))
    band_h = jnp.broadcast_to(_band_matrix(H, pad), (tb, H, H))

    # horizontal window counts, then vertical window counts (both on the MXU)
    hcnt = jnp.einsum("bhv,bvw->bhw", m, band_w,
                      preferred_element_type=jnp.float32)
    cnt = jnp.einsum("bhv,bvw->bhw", band_h, hcnt,
                     preferred_element_type=jnp.float32)

    # cnt >= 1  <=>  max-pooled mask == 1 ;  mask_block = 1 - pooled
    return (cnt < 0.5).astype(jnp.float32)


# ---------------------------------------------------------------------------
# Kernels
# ---------------------------------------------------------------------------
def _partial_sum_kernel(rbits_ref, psum_ref, *, threshold, pad):
    """Pass 1: per-tile sum of mask_block (for the global renormalization)."""
    mb = _mask_block_from_bits(rbits_ref[...], threshold=threshold, pad=pad)
    psum_ref[...] = jnp.sum(mb, keepdims=True)               # (1, 1, 1)


def _apply_kernel(scale_ref, rbits_ref, x_ref, o_ref, *, threshold, pad):
    """Pass 2: out = mask_block * x * scale (mask_block recomputed per tile)."""
    mb = _mask_block_from_bits(rbits_ref[...], threshold=threshold, pad=pad)
    scale = scale_ref[0]
    o_ref[...] = (mb * x_ref[...].astype(jnp.float32) * scale).astype(o_ref.dtype)


# ---------------------------------------------------------------------------
# Wrapper
# ---------------------------------------------------------------------------
def _compiler_params(grid_rank: int):
    """Mosaic params only when actually running on TPU (the CPU interpret
    fallback must not depend on them)."""
    try:
        on_tpu = jax.devices()[0].platform == "tpu"
    except Exception:
        on_tpu = False
    if not on_tpu:
        return None
    return pltpu.CompilerParams(
        dimension_semantics=("parallel",) * grid_rank,   # megacore split on v7x
        vmem_limit_bytes=32 * 1024 * 1024,               # safe on v5e/v6e/v7x
    )


def _pick_batch_tile(B: int, H: int, W: int) -> int:
    """Largest divisor of B whose double-buffered working set stays well under
    a v7x-safe VMEM budget (~10 f32 tile-sized buffers per grid step:
    2x(bits + x + out) double-buffered + mask/count temporaries)."""
    budget_bytes = 12 * 1024 * 1024
    per_row_bytes = H * W * 4 * 10
    tb = max(1, min(B, budget_bytes // max(per_row_bytes, 1)))
    while B % tb:
        tb -= 1
    return tb


def dropblock(x, key, *, block_size: int = 7, p: float = 0.5, training: bool = True):
    """DropBlock forward. `x` is NCHW, `key` is a jax.random key."""
    if not training:
        return x
    if block_size % 2 != 1:
        raise ValueError("block_size must be odd (required for a shape-preserving "
                         "stride-1 max_pool2d, as in the reference module).")

    N, C, H, W = x.shape
    B = N * C
    pad = block_size // 2

    # gamma uses x.shape[-1] (= W), exactly as in the PyTorch module.
    gamma = p * (W ** 2) / (block_size ** 2 * (W - block_size + 1) ** 2)
    gamma = min(max(gamma, 0.0), 1.0)
    threshold = int(round(gamma * (1 << 24)))        # P(rbits < threshold) = gamma

    # TODO(synk): for production conv shapes with W < 128, a channels-last
    # (N, H, W, C) layout would make the output stores lane-dense; the
    # NCHW-derived (B, H, W) layout is kept here to match the reference module.
    x3 = x.reshape(B, H, W)
    rbits = jax.random.randint(key, (B, H, W), 0, 1 << 24, dtype=jnp.int32)

    tb = _pick_batch_tile(B, H, W)
    nb = B // tb
    grid = (nb,)
    tile_spec = pl.BlockSpec((tb, H, W), lambda b: (b, 0, 0))
    cparams = _compiler_params(len(grid))

    # ---- pass 1: per-tile partial sums of mask_block -----------------------
    psums = pl.pallas_call(
        functools.partial(_partial_sum_kernel, threshold=threshold, pad=pad),
        out_shape=jax.ShapeDtypeStruct((nb, 1, 1), jnp.float32),
        grid=grid,
        in_specs=[tile_spec],
        out_specs=pl.BlockSpec((1, 1, 1), lambda b: (b, 0, 0)),
        compiler_params=cparams,
    )(rbits)

    numel = jnp.float32(B * H * W)
    total = jnp.sum(psums)
    scale = (numel / total).reshape(1)   # inf if everything dropped (matches PyTorch)

    # ---- pass 2: out = mask_block * x * scale -------------------------------
    out3 = pl.pallas_call(
        functools.partial(_apply_kernel, threshold=threshold, pad=pad),
        out_shape=jax.ShapeDtypeStruct((B, H, W), x.dtype),
        grid=grid,
        in_specs=[
            pl.BlockSpec(memory_space=pltpu.MemorySpace.SMEM),   # scale (1,) f32
            tile_spec,                                           # rbits
            tile_spec,                                           # x
        ],
        out_specs=tile_spec,
        compiler_params=cparams,
    )(scale, rbits, x3)

    return out3.reshape(N, C, H, W)


# ---------------------------------------------------------------------------
# Pure-JAX reference (same random bits, same semantics) for a correctness check
# ---------------------------------------------------------------------------
def _dropblock_reference(x, key, *, block_size=7, p=0.5):
    N, C, H, W = x.shape
    B = N * C
    pad = block_size // 2
    gamma = p * (W ** 2) / (block_size ** 2 * (W - block_size + 1) ** 2)
    gamma = min(max(gamma, 0.0), 1.0)
    threshold = int(round(gamma * (1 << 24)))
    rbits = jax.random.randint(key, (B, H, W), 0, 1 << 24, dtype=jnp.int32)
    mask = (rbits < threshold).astype(jnp.float32)
    pooled = lax.reduce_window(mask, jnp.float32(0), lax.max,
                               (1, block_size, block_size), (1, 1, 1),
                               [(0, 0), (pad, pad), (pad, pad)])
    mask_block = 1.0 - pooled
    scale = jnp.float32(B * H * W) / jnp.sum(mask_block)
    out = mask_block * x.reshape(B, H, W).astype(jnp.float32) * scale
    return out.reshape(N, C, H, W).astype(x.dtype)


if __name__ == "__main__":
    root = jax.random.PRNGKey(0)
    kx, kmask = jax.random.split(root)
    x = jax.random.normal(kx, (2, 4, 16, 16), dtype=jnp.float32)

    out = jax.block_until_ready(dropblock(x, kmask, block_size=7, p=0.5, training=True))
    assert out.shape == x.shape and out.dtype == x.dtype

    ref = _dropblock_reference(x, kmask, block_size=7, p=0.5)
    assert jnp.allclose(out, ref, rtol=1e-5, atol=1e-5), float(jnp.max(jnp.abs(out - ref)))

    # Eval mode is identity.
    out_eval = jax.block_until_ready(dropblock(x, kmask, training=False))
    assert jnp.array_equal(out_eval, x)

    print("KERNEL_OK")
</pallas_src>

<mosaic_0001>
module attributes {stable_mosaic.version = 11 : i64} {
  func.func @_partial_sum_kernel(%arg0: i32, %arg1: memref<8x16x16xi32, #tpu.memory_space<vmem>>, %arg2: memref<1x1x1xf32, #tpu.memory_space<vmem>>) attributes {dimension_semantics = [#tpu.dimension_semantics<arbitrary>], iteration_bounds = array<i64: 1>, scalar_prefetch = 0 : i64, scratch_operands = 0 : i64, tpu.core_type = #tpu.core_type<tc>, window_params = [{transform_indices = @transform_0, window_bounds = array<i64: 8, 16, 16>}, {transform_indices = @transform_1, window_bounds = array<i64: 1, 1, 1>}]} {
    %c0 = arith.constant 0 : index
    %c0_0 = arith.constant 0 : index
    %c0_1 = arith.constant 0 : index
    %0 = vector.load %arg1[%c0, %c0_0, %c0_1] : memref<8x16x16xi32, #tpu.memory_space<vmem>>, vector<8x16x16xi32>
    %c438262_i32 = arith.constant 438262 : i32
    %1 = vector.broadcast %c438262_i32 : i32 to vector<8x16x16xi32>
    %2 = arith.cmpi slt, %0, %1 : vector<8x16x16xi32>
    %3 = arith.extui %2 : vector<8x16x16xi1> to vector<8x16x16xi32>
    %4 = arith.sitofp %3 : vector<8x16x16xi32> to vector<8x16x16xf32>
    %5 = tpu.iota {dimensions = array<i32: 0>} : vector<16x16xi32>
    %6 = tpu.iota {dimensions = array<i32: 1>} : vector<16x16xi32>
    %7 = arith.subi %5, %6 : vector<16x16xi32>
    %8 = math.absi %7 : vector<16x16xi32>
    %c3_i32 = arith.constant 3 : i32
    %9 = vector.broadcast %c3_i32 : i32 to vector<16x16xi32>
    %10 = arith.cmpi sle, %8, %9 : vector<16x16xi32>
    %11 = arith.extui %10 : vector<16x16xi1> to vector<16x16xi32>
    %12 = arith.sitofp %11 : vector<16x16xi32> to vector<16x16xf32>
    %13 = vector.shape_cast %12 : vector<16x16xf32> to vector<1x16x16xf32>
    %14 = vector.broadcast %13 : vector<1x16x16xf32> to vector<8x16x16xf32>
    %15 = tpu.iota {dimensions = array<i32: 0>} : vector<16x16xi32>
    %16 = tpu.iota {dimensions = array<i32: 1>} : vector<16x16xi32>
    %17 = arith.subi %15, %16 : vector<16x16xi32>
    %18 = math.absi %17 : vector<16x16xi32>
    %c3_i32_2 = arith.constant 3 : i32
    %19 = vector.broadcast %c3_i32_2 : i32 to vector<16x16xi32>
    %20 = arith.cmpi sle, %18, %19 : vector<16x16xi32>
    %21 = arith.extui %20 : vector<16x16xi1> to vector<16x16xi32>
    %22 = arith.sitofp %21 : vector<16x16xi32> to vector<16x16xf32>
    %23 = vector.shape_cast %22 : vector<16x16xf32> to vector<1x16x16xf32>
    %24 = vector.broadcast %23 : vector<1x16x16xf32> to vector<8x16x16xf32>
    "tpu.trace_start"() <{level = 10 : i32, message = "bhv,bvw->bhw"}> : () -> ()
    %cst = arith.constant dense<0.000000e+00> : vector<8x16x16xf32>
    %25 = tpu.matmul %4, %14, %cst {dimension_numbers = #tpu.dot_dimension_numbers<[2], [1], [1], [2], [0, 0, 0, 1, 1, 2], [0], [0]>} : vector<8x16x16xf32>, vector<8x16x16xf32>, vector<8x16x16xf32> -> vector<8x16x16xf32>
    %cst_3 = arith.constant dense<0.000000e+00> : vector<8x16x16xf32>
    %26 = tpu.matmul %24, %25, %cst_3 {dimension_numbers = #tpu.dot_dimension_numbers<[2], [1], [1], [2], [0, 0, 0, 1, 1, 2], [0], [0]>} : vector<8x16x16xf32>, vector<8x16x16xf32>, vector<8x16x16xf32> -> vector<8x16x16xf32>
    %cst_4 = arith.constant 5.000000e-01 : f32
    "tpu.trace_stop"() : () -> ()
    %27 = vector.broadcast %cst_4 : f32 to vector<8x16x16xf32>
    %28 = arith.cmpf olt, %26, %27 : vector<8x16x16xf32>
    %29 = arith.extui %28 : vector<8x16x16xi1> to vector<8x16x16xi32>
    %30 = arith.sitofp %29 : vector<8x16x16xi32> to vector<8x16x16xf32>
    %31 = vector.shape_cast %30 : vector<8x16x16xf32> to vector<1x8x16x16xf32>
    %cst_5 = arith.constant dense<0.000000e+00> : vector<1xf32>
    %32 = vector.multi_reduction <add>, %31, %cst_5 [1, 2, 3] : vector<1x8x16x16xf32> to vector<1xf32>
    %33 = vector.shape_cast %32 : vector<1xf32> to vector<1x1x1x1xf32>
    %34 = vector.extract %33[0, 0, 0, 0] : f32 from vector<1x1x1x1xf32>
    %35 = vector.broadcast %34 : f32 to vector<1x1x1xf32>
    %c0_6 = arith.constant 0 : index
    %c0_7 = arith.constant 0 : index
    %c0_8 = arith.constant 0 : index
    %36 = vector.load %arg2[%c0_6, %c0_7, %c0_8] : memref<1x1x1xf32, #tpu.memory_space<vmem>>, vector<1x1x1xf32>
    tpu.vector_store %arg2[%c0_6, %c0_7, %c0_8], %35 {strides = array<i32>} : memref<1x1x1xf32, #tpu.memory_space<vmem>>, vector<1x1x1xf32>,
    return
  }
  func.func @transform_0(%arg0: i32) -> (i32, i32, i32) {
    %c0_i32 = arith.constant 0 : i32
    %c0_i32_0 = arith.constant 0 : i32
    %c0_i32_1 = arith.constant 0 : i32
    return %arg0, %c0_i32, %c0_i32_0 : i32, i32, i32
  }
  func.func @transform_1(%arg0: i32) -> (i32, i32, i32) {
    %c0_i32 = arith.constant 0 : i32
    %c0_i32_0 = arith.constant 0 : i32
    %c0_i32_1 = arith.constant 0 : i32
    return %arg0, %c0_i32, %c0_i32_0 : i32, i32, i32
  }
}

</mosaic_0001>

<llo_original>
// kernel: tpu_custom_call.1
$region0: #{tpu_custom_call.1}
  #allocation0 [shape = 'u32[]', space=smem, size = 0x4, offset = 0x4, fixed_abs, tag = 'smem constant byte address 0x4 - core index']
  #allocation1 [shape = 'u32[144,128]{1,0:T(1,128)}', space=vmem, size = 0x12000, scoped, tag = 'internal scratch']
  %s0 = inlined_call_operand.hbm [shape: s32[8,16,16], index: 0, kind: input, shape index: {}]
  %s1 = inlined_call_operand.hbm [shape: f32[1,1,1], index: 1, kind: output, shape index: {}]
  %s2 = sld [smem:[#allocation0]]
  $region18: #{tpu_custom_call.1} parent=0
    _
  %s4 = ssub.s32 1, %s2
  %s5 = scalar_select 0, %s4, %s2
  $region1: #{tpu_custom_call.1} parent=0
    #allocation2 [shape = 'u8[65536]{0}', space=vmem, size = 0x10000, scoped, tag = 'input window, operand 0, single buffered']
    #allocation3 [shape = 's32[1]{0}', space=sflag, size = 0x4, scoped, tag = 'scoped memory for tpu_custom_call.1']
    #allocation4 [shape = 's32[1]{0}', space=sflag, size = 0x4, scoped, tag = 'scoped memory for tpu_custom_call.1']
    #allocation5 [shape = 'u8[512]{0}', space=vmem, size = 0x400, scoped, tag = 'output window, operand 0, single buffered']
    %6 = vsyncpa [#allocation3], 0
    %7 = vsyncpa [#allocation4], 0
    // Predicated region
    $region2: #{tpu_custom_call.1} parent=1 // pred_check
      _
    $region3: #{tpu_custom_call.1} parent=1 // pred_check_branch
      %9 = sbr.rel (0) target = $region5
    $region4: #{tpu_custom_call.1} parent=1 // pred_region
      %s11 = ssub.s32 2048, 2048
      %12 = vsyncadd [#allocation3], %s11
      %s13 = sshll.u32 [#allocation2], 4
      %s14 = int_to_ptr.vmem [resolvable:$true] %s13
      %19 = dma.hbm_to_vmem [thread:$0]  %s0, 2048, %s14, [#allocation3], 128, 128, 8
    $region5: #{tpu_custom_call.1} parent=1 // pred_fallthru
      _
    // Predicated region
    $region6: #{tpu_custom_call.1} parent=1 // pred_check
      _
    $region7: #{tpu_custom_call.1} parent=1 // pred_check_branch
      %21 = sbr.rel (0) target = $region9
    $region8: #{tpu_custom_call.1} parent=1 // pred_region
      %22 = dma.done [#allocation3], 2048
    $region9: #{tpu_custom_call.1} parent=1 // pred_fallthru
      _
    %v23 = vld [vmem:[#allocation2] sm:$0xff]
    %v24 = vld [vmem:[#allocation2 + $0x8] sm:$0xff]
    %v25 = vld [vmem:[#allocation2 + $0x10] sm:$0xff]
    %v26 = vld [vmem:[#allocation2 + $0x18] sm:$0xff]
    %v27 = vld [vmem:[#allocation2 + $0x20] sm:$0xff]
    %v28 = vld [vmem:[#allocation2 + $0x28] sm:$0xff]
    %v29 = vld [vmem:[#allocation2 + $0x30] sm:$0xff]
    %v30 = vld [vmem:[#allocation2 + $0x38] sm:$0xff]
    %v31 = vld [vmem:[#allocation2 + $0x40] sm:$0xff]
    %v32 = vld [vmem:[#allocation2 + $0x48] sm:$0xff]
    %v33 = vld [vmem:[#allocation2 + $0x50] sm:$0xff]
    %v34 = vld [vmem:[#allocation2 + $0x58] sm:$0xff]
    %v35 = vld [vmem:[#allocation2 + $0x60] sm:$0xff]
    %v36 = vld [vmem:[#allocation2 + $0x68] sm:$0xff]
    %v37 = vld [vmem:[#allocation2 + $0x70] sm:$0xff]
    %v38 = vld [vmem:[#allocation2 + $0x78] sm:$0xff]
    %vm39 = vcmp.lt.s32.totalorder %v23, 438262
    %vm40 = vcmp.lt.s32.totalorder %v24, 438262
    %vm41 = vcmp.lt.s32.totalorder %v25, 438262
    %vm42 = vcmp.lt.s32.totalorder %v26, 438262
    %vm43 = vcmp.lt.s32.totalorder %v27, 438262
    %vm44 = vcmp.lt.s32.totalorder %v28, 438262
    %vm45 = vcmp.lt.s32.totalorder %v29, 438262
    %vm46 = vcmp.lt.s32.totalorder %v30, 438262
    %vm47 = vcmp.lt.s32.totalorder %v31, 438262
    %vm48 = vcmp.lt.s32.totalorder %v32, 438262
    %vm49 = vcmp.lt.s32.totalorder %v33, 438262
    %vm50 = vcmp.lt.s32.totalorder %v34, 438262
    %vm51 = vcmp.lt.s32.totalorder %v35, 438262
    %vm52 = vcmp.lt.s32.totalorder %v36, 438262
    %vm53 = vcmp.lt.s32.totalorder %v37, 438262
    %vm54 = vcmp.lt.s32.totalorder %v38, 438262
    %v55 = vsel %vm39, 1, 0
    %v56 = vsel %vm40, 1, 0
    %v57 = vsel %vm41, 1, 0
    %v58 = vsel %vm42, 1, 0
    %v59 = vsel %vm43, 1, 0
    %v60 = vsel %vm44, 1, 0
    %v61 = vsel %vm45, 1, 0
    %v62 = vsel %vm46, 1, 0
    %v63 = vsel %vm47, 1, 0
    %v64 = vsel %vm48, 1, 0
    %v65 = vsel %vm49, 1, 0
    %v66 = vsel %vm50, 1, 0
    %v67 = vsel %vm51, 1, 0
    %v68 = vsel %vm52, 1, 0
    %v69 = vsel %vm53, 1, 0
    %v70 = vsel %vm54, 1, 0
    %v71 = vcvt.s32.f32 %v55
    %v72 = vcvt.s32.f32 %v56
    %v73 = vcvt.s32.f32 %v57
    %v74 = vcvt.s32.f32 %v58
    %v75 = vcvt.s32.f32 %v59
    %v76 = vcvt.s32.f32 %v60
    %v77 = vcvt.s32.f32 %v61
    %v78 = vcvt.s32.f32 %v62
    %v79 = vcvt.s32.f32 %v63
    %v80 = vcvt.s32.f32 %v64
    %v81 = vcvt.s32.f32 %v65
    %v82 = vcvt.s32.f32 %v66
    %v83 = vcvt.s32.f32 %v67
    %v84 = vcvt.s32.f32 %v68
    %v85 = vcvt.s32.f32 %v69
    %v86 = vcvt.s32.f32 %v70
    %v87 = vlaneseq
    %v88 = vshrl.u32 %v87, 7
    %v89 = vadd.s32 %v88, 8
    %v90 = vlaneseq
    %v91 = vand.u32 %v90, 127
    %v92 = vsub.s32 %v88, %v91
    %v93 = vsub.s32 %v89, %v91
    %vm94 = vcmp.lt.s32.totalorder %v92, 0
    %v95 = vsub.s32 0, %v92
    %v96 = vsel %vm94, %v95, %v92
    %vm97 = vcmp.lt.s32.totalorder %v93, 0
    %v98 = vsub.s32 0, %v93
    %v99 = vsel %vm97, %v98, %v93
    %vm100 = vcmp.le.s32.totalorder %v96, 3
    %vm101 = vcmp.le.s32.totalorder %v99, 3
    %v102 = vsel %vm100, 1, 0
    %v103 = vsel %vm101, 1, 0
    %v104 = vcvt.s32.f32 %v102
    %v105 = vcvt.s32.f32 %v103
    %vm106 = vcmask 130048
    %v108 = vsel %vm106, %v71, 0
    %v111 = vsel %vm106, %v72, 0
    %113 = vmatprep.subr.mxu0 0.0
    %114 = vmatpush1.msra.mxu0 0.0
    %115 = vmatprep.subr.mxu0 0.0
    %116 = vmatpush1.msra.mxu0 0.0
    %117 = vmatprep.subr.mxu0 0.0
    %118 = vmatpush1.msra.mxu0 0.0
    %119 = vmatprep.subr.mxu0 0.0
    %120 = vmatpush1.msra.mxu0 0.0
    %121 = vmatprep.subr.mxu0 0.0
    %122 = vmatpush1.msra.mxu0 0.0
    %123 = vmatprep.subr.mxu0 0.0
    %124 = vmatpush1.msra.mxu0 0.0
    %125 = vmatprep.subr.mxu0 0.0
    %126 = vmatpush1.msra.mxu0 0.0
    %127 = vmatprep.subr.mxu0 0.0
    %128 = vmatpush1.msra.mxu0 0.0
    %129 = vmatprep.subr.mxu0 0.0
    %130 = vmatpush1.msra.mxu0 0.0
    %131 = vmatprep.subr.mxu0 0.0
    %132 = vmatpush1.msra.mxu0 0.0
    %133 = vmatprep.subr.mxu0 0.0
    %134 = vmatpush1.msra.mxu0 0.0
    %135 = vmatprep.subr.mxu0 0.0
    %136 = vmatpush1.msra.mxu0 0.0
    %137 = vmatprep.subr.mxu0 0.0
    %138 = vmatpush1.msra.mxu0 0.0
    %139 = vmatprep.subr.mxu0 0.0
    %140 = vmatpush1.msra.mxu0 0.0
    %141 = vmatprep.subr.mxu0 0.0
    %142 = vmatpush1.msra.mxu0 %v105
    %143 = vmatprep.subr.mxu0 0.0
    %144 = vmatpush1.msra.mxu0 %v104
    %145 = vmatprep.subr.mxu0 0.0
    %146 = vmatpush2.msra.mxu0 0.0
    %147 = vmatprep.subr.mxu0 0.0
    %148 = vmatpush2.msra.mxu0 0.0
    %149 = vmatprep.subr.mxu0 0.0
    %150 = vmatpush2.msra.mxu0 0.0
    %151 = vmatprep.subr.mxu0 0.0
    %152 = vmatpush2.msra.mxu0 0.0
    %153 = vmatprep.subr.mxu0 0.0
    %154 = vmatpush2.msra.mxu0 0.0
    %155 = vmatprep.subr.mxu0 0.0
    %156 = vmatpush2.msra.mxu0 0.0
    %157 = vmatprep.subr.mxu0 0.0
    %158 = vmatpush2.msra.mxu0 0.0
    %159 = vmatprep.subr.mxu0 0.0
    %160 = vmatpush2.msra.mxu0 0.0
    %161 = vmatprep.subr.mxu0 0.0
    %162 = vmatpush2.msra.mxu0 0.0
    %163 = vmatprep.subr.mxu0 0.0
    %164 = vmatpush2.msra.mxu0 0.0
    %165 = vmatprep.subr.mxu0 0.0
    %166 = vmatpush2.msra.mxu0 0.0
    %167 = vmatprep.subr.mxu0 0.0
    %168 = vmatpush2.msra.mxu0 0.0
    %169 = vmatprep.subr.mxu0 0.0
    %170 = vmatpush2.msra.mxu0 0.0
    %171 = vmatprep.subr.mxu0 0.0
    %172 = vmatpush2.msra.mxu0 0.0
    %173 = vmatprep.subr.mxu0 0.0
    %174 = vmatpush2.msra.mxu0 0.0
    %175 = vmatprep.subr.mxu0 0.0
    %176 = vmatpush2.msra.mxu0 0.0
    %177 = vmatprep.mubr.f32.mxu0 0.0
    %178 = vmatmul.mubr.f32.gmra.mxu0 %v108
    %v179 = vpop.f32.mrf.mxu0
    %v180 = vadd.f32 0.0, %v179
    %v181 = vpop.f32.mrf.mxu0
    %182 = vmatprep.mubr.f32.mxu0 0.0
    %183 = vmatmul.mubr.f32.gmra.mxu0 %v111
    %v184 = vpop.f32.mrf.mxu0
    %v185 = vadd.f32 0.0, %v184
    %v186 = vpop.f32.mrf.mxu0
    %187 = vdwg.mxu0
    %v189 = vsel %vm106, %v73, 0
    %v192 = vsel %vm106, %v74, 0
    %194 = vmatprep.subr.mxu0 0.0
    %195 = vmatpush1.msra.mxu0 0.0
    %196 = vmatprep.subr.mxu0 0.0
    %197 = vmatpush1.msra.mxu0 0.0
    %198 = vmatprep.subr.mxu0 0.0
    %199 = vmatpush1.msra.mxu0 0.0
    %200 = vmatprep.subr.mxu0 0.0
    %201 = vmatpush1.msra.mxu0 0.0
    %202 = vmatprep.subr.mxu0 0.0
    %203 = vmatpush1.msra.mxu0 0.0
    %204 = vmatprep.subr.mxu0 0.0
    %205 = vmatpush1.msra.mxu0 0.0
    %206 = vmatprep.subr.mxu0 0.0
    %207 = vmatpush1.msra.mxu0 0.0
    %208 = vmatprep.subr.mxu0 0.0
    %209 = vmatpush1.msra.mxu0 0.0
    %210 = vmatprep.subr.mxu0 0.0
    %211 = vmatpush1.msra.mxu0 0.0
    %212 = vmatprep.subr.mxu0 0.0
    %213 = vmatpush1.msra.mxu0 0.0
    %214 = vmatprep.subr.mxu0 0.0
    %215 = vmatpush1.msra.mxu0 0.0
    %216 = vmatprep.subr.mxu0 0.0
    %217 = vmatpush1.msra.mxu0 0.0
    %218 = vmatprep.subr.mxu0 0.0
    %219 = vmatpush1.msra.mxu0 0.0
    %220 = vmatprep.subr.mxu0 0.0
    %221 = vmatpush1.msra.mxu0 0.0
    %222 = vmatprep.subr.mxu0 0.0
    %223 = vmatpush1.msra.mxu0 %v105
    %224 = vmatprep.subr.mxu0 0.0
    %225 = vmatpush1.msra.mxu0 %v104
    %226 = vmatprep.subr.mxu0 0.0
    %227 = vmatpush2.msra.mxu0 0.0
    %228 = vmatprep.subr.mxu0 0.0
    %229 = vmatpush2.msra.mxu0 0.0
    %230 = vmatprep.subr.mxu0 0.0
    %231 = vmatpush2.msra.mxu0 0.0
    %232 = vmatprep.subr.mxu0 0.0
    %233 = vmatpush2.msra.mxu0 0.0
    %234 = vmatprep.subr.mxu0 0.0
    %235 = vmatpush2.msra.mxu0 0.0
    %236 = vmatprep.subr.mxu0 0.0
    %237 = vmatpush2.msra.mxu0 0.0
    %238 = vmatprep.subr.mxu0 0.0
    %239 = vmatpush2.msra.mxu0 0.0
    %240 = vmatprep.subr.mxu0 0.0
    %241 = vmatpush2.msra.mxu0 0.0
    %242 = vmatprep.subr.mxu0 0.0
    %243 = vmatpush2.msra.mxu0 0.0
    %244 = vmatprep.subr.mxu0 0.0
    %245 = vmatpush2.msra.mxu0 0.0
    %246 = vmatprep.subr.mxu0 0.0
    %247 = vmatpush2.msra.mxu0 0.0
    %248 = vmatprep.subr.mxu0 0.0
    %249 = vmatpush2.msra.mxu0 0.0
    %250 = vmatprep.subr.mxu0 0.0
    %251 = vmatpush2.msra.mxu0 0.0
    %252 = vmatprep.subr.mxu0 0.0
    %253 = vmatpush2.msra.mxu0 0.0
    %254 = vmatprep.subr.mxu0 0.0
    %255 = vmatpush2.msra.mxu0 0.0
    %256 = vmatprep.subr.mxu0 0.0
    %257 = vmatpush2.msra.mxu0 0.0
    %258 = vmatprep.mubr.f32.mxu0 0.0
    %259 = vmatmul.mubr.f32.gmra.mxu0 %v189
    %v260 = vpop.f32.mrf.mxu0
    %v261 = vadd.f32 0.0, %v260
    %v262 = vpop.f32.mrf.mxu0
    %263 = vmatprep.mubr.f32.mxu0 0.0
    %264 = vmatmul.mubr.f32.gmra.mxu0 %v192
    %v265 = vpop.f32.mrf.mxu0
    %v266 = vadd.f32 0.0, %v265
    %v267 = vpop.f32.mrf.mxu0
    %268 = vdwg.mxu0
    %v270 = vsel %vm106, %v75, 0
    %v273 = vsel %vm106, %v76, 0
    %275 = vmatprep.subr.mxu0 0.0
    %276 = vmatpush1.msra.mxu0 0.0
    %277 = vmatprep.subr.mxu0 0.0
    %278 = vmatpush1.msra.mxu0 0.0
    %279 = vmatprep.subr.mxu0 0.0
    %280 = vmatpush1.msra.mxu0 0.0
    %281 = vmatprep.subr.mxu0 0.0
    %282 = vmatpush1.msra.mxu0 0.0
    %283 = vmatprep.subr.mxu0 0.0
    %284 = vmatpush1.msra.mxu0 0.0
    %285 = vmatprep.subr.mxu0 0.0
    %286 = vmatpush1.msra.mxu0 0.0
    %287 = vmatprep.subr.mxu0 0.0
    %288 = vmatpush1.msra.mxu0 0.0
    %289 = vmatprep.subr.mxu0 0.0
    %290 = vmatpush1.msra.mxu0 0.0
    %291 = vmatprep.subr.mxu0 0.0
    %292 = vmatpush1.msra.mxu0 0.0
    %293 = vmatprep.subr.mxu0 0.0
    %294 = vmatpush1.msra.mxu0 0.0
    %295 = vmatprep.subr.mxu0 0.0
    %296 = vmatpush1.msra.mxu0 0.0
    %297 = vmatprep.subr.mxu0 0.0
    %298 = vmatpush1.msra.mxu0 0.0
    %299 = vmatprep.subr.mxu0 0.0
    %300 = vmatpush1.msra.mxu0 0.0
    %301 = vmatprep.subr.mxu0 0.0
    %302 = vmatpush1.msra.mxu0 0.0
    %303 = vmatprep.subr.mxu0 0.0
    %304 = vmatpush1.msra.mxu0 %v105
    %305 = vmatprep.subr.mxu0 0.0
    %306 = vmatpush1.msra.mxu0 %v104
    %307 = vmatprep.subr.mxu0 0.0
    %308 = vmatpush2.msra.mxu0 0.0
    %309 = vmatprep.subr.mxu0 0.0
    %310 = vmatpush2.msra.mxu0 0.0
    %311 = vmatprep.subr.mxu0 0.0
    %312 = vmatpush2.msra.mxu0 0.0
    %313 = vmatprep.subr.mxu0 0.0
    %314 = vmatpush2.msra.mxu0 0.0
    %315 = vmatprep.subr.mxu0 0.0
    %316 = vmatpush2.msra.mxu0 0.0
    %317 = vmatprep.subr.mxu0 0.0
    %318 = vmatpush2.msra.mxu0 0.0
    %319 = vmatprep.subr.mxu0 0.0
    %320 = vmatpush2.msra.mxu0 0.0
    %321 = vmatprep.subr.mxu0 0.0
    %322 = vmatpush2.msra.mxu0 0.0
    %323 = vmatprep.subr.mxu0 0.0
    %324 = vmatpush2.msra.mxu0 0.0
    %325 = vmatprep.subr.mxu0 0.0
    %326 = vmatpush2.msra.mxu0 0.0
    %327 = vmatprep.subr.mxu0 0.0
    %328 = vmatpush2.msra.mxu0 0.0
    %329 = vmatprep.subr.mxu0 0.0
    %330 = vmatpush2.msra.mxu0 0.0
    %331 = vmatprep.subr.mxu0 0.0
    %332 = vmatpush2.msra.mxu0 0.0
    %333 = vmatprep.subr.mxu0 0.0
    %334 = vmatpush2.msra.mxu0 0.0
    %335 = vmatprep.subr.mxu0 0.0
    %336 = vmatpush2.msra.mxu0 0.0
    %337 = vmatprep.subr.mxu0 0.0
    %338 = vmatpush2.msra.mxu0 0.0
    %339 = vmatprep.mubr.f32.mxu0 0.0
    %340 = vmatmul.mubr.f32.gmra.mxu0 %v270
    %v341 = vpop.f32.mrf.mxu0
    %v342 = vadd.f32 0.0, %v341
    %v343 = vpop.f32.mrf.mxu0
    %344 = vmatprep.mubr.f32.mxu0 0.0
    %345 = vmatmul.mubr.f32.gmra.mxu0 %v273
    %v346 = vpop.f32.mrf.mxu0
    %v347 = vadd.f32 0.0, %v346
    %v348 = vpop.f32.mrf.mxu0
    %349 = vdwg.mxu0
    %v351 = vsel %vm106, %v77, 0
    %v354 = vsel %vm106, %v78, 0
    %356 = vmatprep.subr.mxu0 0.0
    %357 = vmatpush1.msra.mxu0 0.0
    %358 = vmatprep.subr.mxu0 0.0
    %359 = vmatpush1.msra.mxu0 0.0
    %360 = vmatprep.subr.mxu0 0.0
    %361 = vmatpush1.msra.mxu0 0.0
    %362 = vmatprep.subr.mxu0 0.0
    %363 = vmatpush1.msra.mxu0 0.0
    %364 = vmatprep.subr.mxu0 0.0
    %365 = vmatpush1.msra.mxu0 0.0
    %366 = vmatprep.subr.mxu0 0.0
    %367 = vmatpush1.msra.mxu0 0.0
    %368 = vmatprep.subr.mxu0 0.0
    %369 = vmatpush1.msra.mxu0 0.0
    %370 = vmatprep.subr.mxu0 0.0
    %371 = vmatpush1.msra.mxu0 0.0
    %372 = vmatprep.subr.mxu0 0.0
    %373 = vmatpush1.msra.mxu0 0.0
    %374 = vmatprep.subr.mxu0 0.0
    %375 = vmatpush1.msra.mxu0 0.0
    %376 = vmatprep.subr.mxu0 0.0
    %377 = vmatpush1.msra.mxu0 0.0
    %378 = vmatprep.subr.mxu0 0.0
    %379 = vmatpush1.msra.mxu0 0.0
    %380 = vmatprep.subr.mxu0 0.0
    %381 = vmatpush1.msra.mxu0 0.0
    %382 = vmatprep.subr.mxu0 0.0
    %383 = vmatpush1.msra.mxu0 0.0
    %384 = vmatprep.subr.mxu0 0.0
    %385 = vmatpush1.msra.mxu0 %v105
    %386 = vmatprep.subr.mxu0 0.0
    %387 = vmatpush1.msra.mxu0 %v104
    %388 = vmatprep.subr.mxu0 0.0
    %389 = vmatpush2.msra.mxu0 0.0
    %390 = vmatprep.subr.mxu0 0.0
    %391 = vmatpush2.msra.mxu0 0.0
    %392 = vmatprep.subr.mxu0 0.0
    %393 = vmatpush2.msra.mxu0 0.0
    %394 = vmatprep.subr.mxu0 0.0
    %395 = vmatpush2.msra.mxu0 0.0
    %396 = vmatprep.subr.mxu0 0.0
    %397 = vmatpush2.msra.mxu0 0.0
    %398 = vmatprep.subr.mxu0 0.0
    %399 = vmatpush2.msra.mxu0 0.0
    %400 = vmatprep.subr.mxu0 0.0
    %401 = vmatpush2.msra.mxu0 0.0
    %402 = vmatprep.subr.mxu0 0.0
    %403 = vmatpush2.msra.mxu0 0.0
    %404 = vmatprep.subr.mxu0 0.0
    %405 = vmatpush2.msra.mxu0 0.0
    %406 = vmatprep.subr.mxu0 0.0
    %407 = vmatpush2.msra.mxu0 0.0
    %408 = vmatprep.subr.mxu0 0.0
    %409 = vmatpush2.msra.mxu0 0.0
    %410 = vmatprep.subr.mxu0 0.0
    %411 = vmatpush2.msra.mxu0 0.0
    %412 = vmatprep.subr.mxu0 0.0
    %413 = vmatpush2.msra.mxu0 0.0
    %414 = vmatprep.subr.mxu0 0.0
    %415 = vmatpush2.msra.mxu0 0.0
    %416 = vmatprep.subr.mxu0 0.0
    %417 = vmatpush2.msra.mxu0 0.0
    %418 = vmatprep.subr.mxu0 0.0
    %419 = vmatpush2.msra.mxu0 0.0
    %420 = vmatprep.mubr.f32.mxu0 0.0
    %421 = vmatmul.mubr.f32.gmra.mxu0 %v351
    %v422 = vpop.f32.mrf.mxu0
    %v423 = vadd.f32 0.0, %v422
    %v424 = vpop.f32.mrf.mxu0
    %425 = vmatprep.mubr.f32.mxu0 0.0
    %426 = vmatmul.mubr.f32.gmra.mxu0 %v354
    %v427 = vpop.f32.mrf.mxu0
    %v428 = vadd.f32 0.0, %v427
    %v429 = vpop.f32.mrf.mxu0
    %430 = vdwg.mxu0
    %v432 = vsel %vm106, %v79, 0
    %v435 = vsel %vm106, %v80, 0
    %437 = vmatprep.subr.mxu0 0.0
    %438 = vmatpush1.msra.mxu0 0.0
    %439 = vmatprep.subr.mxu0 0.0
    %440 = vmatpush1.msra.mxu0 0.0
    %441 = vmatprep.subr.mxu0 0.0
    %442 = vmatpush1.msra.mxu0 0.0
    %443 = vmatprep.subr.mxu0 0.0
    %444 = vmatpush1.msra.mxu0 0.0
    %445 = vmatprep.subr.mxu0 0.0
    %446 = vmatpush1.msra.mxu0 0.0
    %447 = vmatprep.subr.mxu0 0.0
    %448 = vmatpush1.msra.mxu0 0.0
    %449 = vmatprep.subr.mxu0 0.0
    %450 = vmatpush1.msra.mxu0 0.0
    %451 = vmatprep.subr.mxu0 0.0
    %452 = vmatpush1.msra.mxu0 0.0
    %453 = vmatprep.subr.mxu0 0.0
    %454 = vmatpush1.msra.mxu0 0.0
    %455 = vmatprep.subr.mxu0 0.0
    %456 = vmatpush1.msra.mxu0 0.0
    %457 = vmatprep.subr.mxu0 0.0
    %458 = vmatpush1.msra.mxu0 0.0
    %459 = vmatprep.subr.mxu0 0.0
    %460 = vmatpush1.msra.mxu0 0.0
    %461 = vmatprep.subr.mxu0 0.0
    %462 = vmatpush1.msra.mxu0 0.0
    %463 = vmatprep.subr.mxu0 0.0
    %464 = vmatpush1.msra.mxu0 0.0
    %465 = vmatprep.subr.mxu0 0.0
    %466 = vmatpush1.msra.mxu0 %v105
    %467 = vmatprep.subr.mxu0 0.0
    %468 = vmatpush1.msra.mxu0 %v104
    %469 = vmatprep.subr.mxu0 0.0
    %470 = vmatpush2.msra.mxu0 0.0
    %471 = vmatprep.subr.mxu0 0.0
    %472 = vmatpush2.msra.mxu0 0.0
    %473 = vmatprep.subr.mxu0 0.0
    %474 = vmatpush2.msra.mxu0 0.0
    %475 = vmatprep.subr.mxu0 0.0
    %476 = vmatpush2.msra.mxu0 0.0
    %477 = vmatprep.subr.mxu0 0.0
    %478 = vmatpush2.msra.mxu0 0.0
    %479 = vmatprep.subr.mxu0 0.0
    %480 = vmatpush2.msra.mxu0 0.0
    %481 = vmatprep.subr.mxu0 0.0
    %482 = vmatpush2.msra.mxu0 0.0
    %483 = vmatprep.subr.mxu0 0.0
    %484 = vmatpush2.msra.mxu0 0.0
    %485 = vmatprep.subr.mxu0 0.0
    %486 = vmatpush2.msra.mxu0 0.0
    %487 = vmatprep.subr.mxu0 0.0
    %488 = vmatpush2.msra.mxu0 0.0
    %489 = vmatprep.subr.mxu0 0.0
    %490 = vmatpush2.msra.mxu0 0.0
    %491 = vmatprep.subr.mxu0 0.0
    %492 = vmatpush2.msra.mxu0 0.0
    %493 = vmatprep.subr.mxu0 0.0
    %494 = vmatpush2.msra.mxu0 0.0
    %495 = vmatprep.subr.mxu0 0.0
    %496 = vmatpush2.msra.mxu0 0.0
    %497 = vmatprep.subr.mxu0 0.0
    %498 = vmatpush2.msra.mxu0 0.0
    %499 = vmatprep.subr.mxu0 0.0
    %500 = vmatpush2.msra.mxu0 0.0
    %501 = vmatprep.mubr.f32.mxu0 0.0
    %502 = vmatmul.mubr.f32.gmra.mxu0 %v432
    %v503 = vpop.f32.mrf.mxu0
    %v504 = vadd.f32 0.0, %v503
    %v505 = vpop.f32.mrf.mxu0
    %506 = vmatprep.mubr.f32.mxu0 0.0
    %507 = vmatmul.mubr.f32.gmra.mxu0 %v435
    %v508 = vpop.f32.mrf.mxu0
    %v509 = vadd.f32 0.0, %v508
    %v510 = vpop.f32.mrf.mxu0
    %511 = vdwg.mxu0
    %v513 = vsel %vm106, %v81, 0
    %v516 = vsel %vm106, %v82, 0
    %518 = vmatprep.subr.mxu0 0.0
    %519 = vmatpush1.msra.mxu0 0.0
    %520 = vmatprep.subr.mxu0 0.0
    %521 = vmatpush1.msra.mxu0 0.0
    %522 = vmatprep.subr.mxu0 0.0
    %523 = vmatpush1.msra.mxu0 0.0
    %524 = vmatprep.subr.mxu0 0.0
    %525 = vmatpush1.msra.mxu0 0.0
    %526 = vmatprep.subr.mxu0 0.0
    %527 = vmatpush1.msra.mxu0 0.0
    %528 = vmatprep.subr.mxu0 0.0
    %529 = vmatpush1.msra.mxu0 0.0
    %530 = vmatprep.subr.mxu0 0.0
    %531 = vmatpush1.msra.mxu0 0.0
    %532 = vmatprep.subr.mxu0 0.0
    %533 = vmatpush1.msra.mxu0 0.0
    %534 = vmatprep.subr.mxu0 0.0
    %535 = vmatpush1.msra.mxu0 0.0
    %536 = vmatprep.subr.mxu0 0.0
    %537 = vmatpush1.msra.mxu0 0.0
    %538 = vmatprep.subr.mxu0 0.0
    %539 = vmatpush1.msra.mxu0 0.0
    %540 = vmatprep.subr.mxu0 0.0
    %541 = vmatpush1.msra.mxu0 0.0
    %542 = vmatprep.subr.mxu0 0.0
    %543 = vmatpush1.msra.mxu0 0.0
    %544 = vmatprep.subr.mxu0 0.0
    %545 = vmatpush1.msra.mxu0 0.0
    %546 = vmatprep.subr.mxu0 0.0
    %547 = vmatpush1.msra.mxu0 %v105
    %548 = vmatprep.subr.mxu0 0.0
    %549 = vmatpush1.msra.mxu0 %v104
    %550 = vmatprep.subr.mxu0 0.0
    %551 = vmatpush2.msra.mxu0 0.0
    %552 = vmatprep.subr.mxu0 0.0
    %553 = vmatpush2.msra.mxu0 0.0
    %554 = vmatprep.subr.mxu0 0.0
    %555 = vmatpush2.msra.mxu0 0.0
    %556 = vmatprep.subr.mxu0 0.0
    %557 = vmatpush2.msra.mxu0 0.0
    %558 = vmatprep.subr.mxu0 0.0
    %559 = vmatpush2.msra.mxu0 0.0
    %560 = vmatprep.subr.mxu0 0.0
    %561 = vmatpush2.msra.mxu0 0.0
    %562 = vmatprep.subr.mxu0 0.0
    %563 = vmatpush2.msra.mxu0 0.0
    %564 = vmatprep.subr.mxu0 0.0
    %565 = vmatpush2.msra.mxu0 0.0
    %566 = vmatprep.subr.mxu0 0.0
    %567 = vmatpush2.msra.mxu0 0.0
    %568 = vmatprep.subr.mxu0 0.0
    %569 = vmatpush2.msra.mxu0 0.0
    %570 = vmatprep.subr.mxu0 0.0
    %571 = vmatpush2.msra.mxu0 0.0
    %572 = vmatprep.subr.mxu0 0.0
    %573 = vmatpush2.msra.mxu0 0.0
    %574 = vmatprep.subr.mxu0 0.0
    %575 = vmatpush2.msra.mxu0 0.0
    %576 = vmatprep.subr.mxu0 0.0
    %577 = vmatpush2.msra.mxu0 0.0
    %578 = vmatprep.subr.mxu0 0.0
    %579 = vmatpush2.msra.mxu0 0.0
    %580 = vmatprep.subr.mxu0 0.0
    %581 = vmatpush2.msra.mxu0 0.0
    %582 = vmatprep.mubr.f32.mxu0 0.0
    %583 = vmatmul.mubr.f32.gmra.mxu0 %v513
    %v584 = vpop.f32.mrf.mxu0
    %v585 = vadd.f32 0.0, %v584
    %v586 = vpop.f32.mrf.mxu0
    %587 = vmatprep.mubr.f32.mxu0 0.0
    %588 = vmatmul.mubr.f32.gmra.mxu0 %v516
    %v589 = vpop.f32.mrf.mxu0
    %v590 = vadd.f32 0.0, %v589
    %v591 = vpop.f32.mrf.mxu0
    %592 = vdwg.mxu0
    %v594 = vsel %vm106, %v83, 0
    %v597 = vsel %vm106, %v84, 0
    %599 = vmatprep.subr.mxu0 0.0
    %600 = vmatpush1.msra.mxu0 0.0
    %601 = vmatprep.subr.mxu0 0.0
    %602 = vmatpush1.msra.mxu0 0.0
    %603 = vmatprep.subr.mxu0 0.0
    %604 = vmatpush1.msra.mxu0 0.0
    %605 = vmatprep.subr.mxu0 0.0
    %606 = vmatpush1.msra.mxu0 0.0
    %607 = vmatprep.subr.mxu0 0.0
    %608 = vmatpush1.msra.mxu0 0.0
    %609 = vmatprep.subr.mxu0 0.0
    %610 = vmatpush1.msra.mxu0 0.0
    %611 = vmatprep.subr.mxu0 0.0
    %612 = vmatpush1.msra.mxu0 0.0
    %613 = vmatprep.subr.mxu0 0.0
    %614 = vmatpush1.msra.mxu0 0.0
    %615 = vmatprep.subr.mxu0 0.0
    %616 = vmatpush1.msra.mxu0 0.0
    %617 = vmatprep.subr.mxu0 0.0
    %618 = vmatpush1.msra.mxu0 0.0
    %619 = vmatprep.subr.mxu0 0.0
    %620 = vmatpush1.msra.mxu0 0.0
    %621 = vmatprep.subr.mxu0 0.0
    %622 = vmatpush1.msra.mxu0 0.0
    %623 = vmatprep.subr.mxu0 0.0
    %624 = vmatpush1.msra.mxu0 0.0
    %625 = vmatprep.subr.mxu0 0.0
    %626 = vmatpush1.msra.mxu0 0.0
    %627 = vmatprep.subr.mxu0 0.0
    %628 = vmatpush1.msra.mxu0 %v105
    %629 = vmatprep.subr.mxu0 0.0
    %630 = vmatpush1.msra.mxu0 %v104
    %631 = vmatprep.subr.mxu0 0.0
    %632 = vmatpush2.msra.mxu0 0.0
    %633 = vmatprep.subr.mxu0 0.0
    %634 = vmatpush2.msra.mxu0 0.0
    %635 = vmatprep.subr.mxu0 0.0
    %636 = vmatpush2.msra.mxu0 0.0
    %637 = vmatprep.subr.mxu0 0.0
    %638 = vmatpush2.msra.mxu0 0.0
    %639 = vmatprep.subr.mxu0 0.0
    %640 = vmatpush2.msra.mxu0 0.0
    %641 = vmatprep.subr.mxu0 0.0
    %642 = vmatpush2.msra.mxu0 0.0
    %643 = vmatprep.subr.mxu0 0.0
    %644 = vmatpush2.msra.mxu0 0.0
    %645 = vmatprep.subr.mxu0 0.0
    %646 = vmatpush2.msra.mxu0 0.0
    %647 = vmatprep.subr.mxu0 0.0
    %648 = vmatpush2.msra.mxu0 0.0
    %649 = vmatprep.subr.mxu0 0.0
    %650 = vmatpush2.msra.mxu0 0.0
    %651 = vmatprep.subr.mxu0 0.0
    %652 = vmatpush2.msra.mxu0 0.0
    %653 = vmatprep.subr.mxu0 0.0
    %654 = vmatpush2.msra.mxu0 0.0
    %655 = vmatprep.subr.mxu0 0.0
    %656 = vmatpush2.msra.mxu0 0.0
    %657 = vmatprep.subr.mxu0 0.0
    %658 = vmatpush2.msra.mxu0 0.0
    %659 = vmatprep.subr.mxu0 0.0
    %660 = vmatpush2.msra.mxu0 0.0
    %661 = vmatprep.subr.mxu0 0.0
    %662 = vmatpush2.msra.mxu0 0.0
    %663 = vmatprep.mubr.f32.mxu0 0.0
    %664 = vmatmul.mubr.f32.gmra.mxu0 %v594
    %v665 = vpop.f32.mrf.mxu0
    %v666 = vadd.f32 0.0, %v665
    %v667 = vpop.f32.mrf.mxu0
    %668 = vmatprep.mubr.f32.mxu0 0.0
    %669 = vmatmul.mubr.f32.gmra.mxu0 %v597
    %v670 = vpop.f32.mrf.mxu0
    %v671 = vadd.f32 0.0, %v670
    %v672 = vpop.f32.mrf.mxu0
    %673 = vdwg.mxu0
    %v675 = vsel %vm106, %v85, 0
    %v678 = vsel %vm106, %v86, 0
    %680 = vmatprep.subr.mxu0 0.0
    %681 = vmatpush1.msra.mxu0 0.0
    %682 = vmatprep.subr.mxu0 0.0
    %683 = vmatpush1.msra.mxu0 0.0
    %684 = vmatprep.subr.mxu0 0.0
    %685 = vmatpush1.msra.mxu0 0.0
    %686 = vmatprep.subr.mxu0 0.0
    %687 = vmatpush1.msra.mxu0 0.0
    %688 = vmatprep.subr.mxu0 0.0
    %689 = vmatpush1.msra.mxu0 0.0
    %690 = vmatprep.subr.mxu0 0.0
    %691 = vmatpush1.msra.mxu0 0.0
    %692 = vmatprep.subr.mxu0 0.0
    %693 = vmatpush1.msra.mxu0 0.0
    %694 = vmatprep.subr.mxu0 0.0
    %695 = vmatpush1.msra.mxu0 0.0
    %696 = vmatprep.subr.mxu0 0.0
    %697 = vmatpush1.msra.mxu0 0.0
    %698 = vmatprep.subr.mxu0 0.0
    %699 = vmatpush1.msra.mxu0 0.0
    %700 = vmatprep.subr.mxu0 0.0
    %701 = vmatpush1.msra.mxu0 0.0
    %702 = vmatprep.subr.mxu0 0.0
    %703 = vmatpush1.msra.mxu0 0.0
    %704 = vmatprep.subr.mxu0 0.0
    %705 = vmatpush1.msra.mxu0 0.0
    %706 = vmatprep.subr.mxu0 0.0
    %707 = vmatpush1.msra.mxu0 0.0
    %708 = vmatprep.subr.mxu0 0.0
    %709 = vmatpush1.msra.mxu0 %v105
    %710 = vmatprep.subr.mxu0 0.0
    %711 = vmatpush1.msra.mxu0 %v104
    %712 = vmatprep.subr.mxu0 0.0
    %713 = vmatpush2.msra.mxu0 0.0
    %714 = vmatprep.subr.mxu0 0.0
    %715 = vmatpush2.msra.mxu0 0.0
    %716 = vmatprep.subr.mxu0 0.0
    %717 = vmatpush2.msra.mxu0 0.0
    %718 = vmatprep.subr.mxu0 0.0
    %719 = vmatpush2.msra.mxu0 0.0
    %720 = vmatprep.subr.mxu0 0.0
    %721 = vmatpush2.msra.mxu0 0.0
    %722 = vmatprep.subr.mxu0 0.0
    %723 = vmatpush2.msra.mxu0 0.0
    %724 = vmatprep.subr.mxu0 0.0
    %725 = vmatpush2.msra.mxu0 0.0
    %726 = vmatprep.subr.mxu0 0.0
    %727 = vmatpush2.msra.mxu0 0.0
    %728 = vmatprep.subr.mxu0 0.0
    %729 = vmatpush2.msra.mxu0 0.0
    %730 = vmatprep.subr.mxu0 0.0
    %731 = vmatpush2.msra.mxu0 0.0
    %732 = vmatprep.subr.mxu0 0.0
    %733 = vmatpush2.msra.mxu0 0.0
    %734 = vmatprep.subr.mxu0 0.0
    %735 = vmatpush2.msra.mxu0 0.0
    %736 = vmatprep.subr.mxu0 0.0
    %737 = vmatpush2.msra.mxu0 0.0
    %738 = vmatprep.subr.mxu0 0.0
    %739 = vmatpush2.msra.mxu0 0.0
    %740 = vmatprep.subr.mxu0 0.0
    %741 = vmatpush2.msra.mxu0 0.0
    %742 = vmatprep.subr.mxu0 0.0
    %743 = vmatpush2.msra.mxu0 0.0
    %744 = vmatprep.mubr.f32.mxu0 0.0
    %745 = vmatmul.mubr.f32.gmra.mxu0 %v675
    %v746 = vpop.f32.mrf.mxu0
    %v747 = vadd.f32 0.0, %v746
    %v748 = vpop.f32.mrf.mxu0
    %749 = vmatprep.mubr.f32.mxu0 0.0
    %750 = vmatmul.mubr.f32.gmra.mxu0 %v678
    %v751 = vpop.f32.mrf.mxu0
    %v752 = vadd.f32 0.0, %v751
    %v753 = vpop.f32.mrf.mxu0
    %754 = vdwg.mxu0
    %v756 = vsel %vm106, %v104, 0
    %v759 = vsel %vm106, %v105, 0
    %761 = vmatprep.subr.mxu0 0.0
    %762 = vmatpush1.msra.mxu0 0.0
    %763 = vmatprep.subr.mxu0 0.0
    %764 = vmatpush1.msra.mxu0 0.0
    %765 = vmatprep.subr.mxu0 0.0
    %766 = vmatpush1.msra.mxu0 0.0
    %767 = vmatprep.subr.mxu0 0.0
    %768 = vmatpush1.msra.mxu0 0.0
    %769 = vmatprep.subr.mxu0 0.0
    %770 = vmatpush1.msra.mxu0 0.0
    %771 = vmatprep.subr.mxu0 0.0
    %772 = vmatpush1.msra.mxu0 0.0
    %773 = vmatprep.subr.mxu0 0.0
    %774 = vmatpush1.msra.mxu0 0.0
    %775 = vmatprep.subr.mxu0 0.0
    %776 = vmatpush1.msra.mxu0 0.0
    %777 = vmatprep.subr.mxu0 0.0
    %778 = vmatpush1.msra.mxu0 0.0
    %779 = vmatprep.subr.mxu0 0.0
    %780 = vmatpush1.msra.mxu0 0.0
    %781 = vmatprep.subr.mxu0 0.0
    %782 = vmatpush1.msra.mxu0 0.0
    %783 = vmatprep.subr.mxu0 0.0
    %784 = vmatpush1.msra.mxu0 0.0
    %785 = vmatprep.subr.mxu0 0.0
    %786 = vmatpush1.msra.mxu0 0.0
    %787 = vmatprep.subr.mxu0 0.0
    %788 = vmatpush1.msra.mxu0 0.0
    %789 = vmatprep.subr.mxu0 0.0
    %790 = vmatpush1.msra.mxu0 %v185
    %791 = vmatprep.subr.mxu0 0.0
    %792 = vmatpush1.msra.mxu0 %v180
    %793 = vmatprep.subr.mxu0 0.0
    %794 = vmatpush2.msra.mxu0 0.0
    %795 = vmatprep.subr.mxu0 0.0
    %796 = vmatpush2.msra.mxu0 0.0
    %797 = vmatprep.subr.mxu0 0.0
    %798 = vmatpush2.msra.mxu0 0.0
    %799 = vmatprep.subr.mxu0 0.0
    %800 = vmatpush2.msra.mxu0 0.0
    %801 = vmatprep.subr.mxu0 0.0
    %802 = vmatpush2.msra.mxu0 0.0
    %803 = vmatprep.subr.mxu0 0.0
    %804 = vmatpush2.msra.mxu0 0.0
    %805 = vmatprep.subr.mxu0 0.0
    %806 = vmatpush2.msra.mxu0 0.0
    %807 = vmatprep.subr.mxu0 0.0
    %808 = vmatpush2.msra.mxu0 0.0
    %809 = vmatprep.subr.mxu0 0.0
    %810 = vmatpush2.msra.mxu0 0.0
    %811 = vmatprep.subr.mxu0 0.0
    %812 = vmatpush2.msra.mxu0 0.0
    %813 = vmatprep.subr.mxu0 0.0
    %814 = vmatpush2.msra.mxu0 0.0
    %815 = vmatprep.subr.mxu0 0.0
    %816 = vmatpush2.msra.mxu0 0.0
    %817 = vmatprep.subr.mxu0 0.0
    %818 = vmatpush2.msra.mxu0 0.0
    %819 = vmatprep.subr.mxu0 0.0
    %820 = vmatpush2.msra.mxu0 0.0
    %821 = vmatprep.subr.mxu0 0.0
    %822 = vmatpush2.msra.mxu0 0.0
    %823 = vmatprep.subr.mxu0 0.0
    %824 = vmatpush2.msra.mxu0 0.0
    %825 = vmatprep.mubr.f32.mxu0 0.0
    %826 = vmatmul.mubr.f32.gmra.mxu0 %v756
    %v827 = vpop.f32.mrf.mxu0
    %v828 = vadd.f32 0.0, %v827
    %v829 = vpop.f32.mrf.mxu0
    %830 = vmatprep.mubr.f32.mxu0 0.0
    %831 = vmatmul.mubr.f32.gmra.mxu0 %v759
    %v832 = vpop.f32.mrf.mxu0
    %v833 = vadd.f32 0.0, %v832
    %v834 = vpop.f32.mrf.mxu0
    %835 = vdwg.mxu0
    %836 = vmatprep.subr.mxu0 0.0
    %837 = vmatpush1.msra.mxu0 0.0
    %838 = vmatprep.subr.mxu0 0.0
    %839 = vmatpush1.msra.mxu0 0.0
    %840 = vmatprep.subr.mxu0 0.0
    %841 = vmatpush1.msra.mxu0 0.0
    %842 = vmatprep.subr.mxu0 0.0
    %843 = vmatpush1.msra.mxu0 0.0
    %844 = vmatprep.subr.mxu0 0.0
    %845 = vmatpush1.msra.mxu0 0.0
    %846 = vmatprep.subr.mxu0 0.0
    %847 = vmatpush1.msra.mxu0 0.0
    %848 = vmatprep.subr.mxu0 0.0
    %849 = vmatpush1.msra.mxu0 0.0
    %850 = vmatprep.subr.mxu0 0.0
    %851 = vmatpush1.msra.mxu0 0.0
    %852 = vmatprep.subr.mxu0 0.0
    %853 = vmatpush1.msra.mxu0 0.0
    %854 = vmatprep.subr.mxu0 0.0
    %855 = vmatpush1.msra.mxu0 0.0
    %856 = vmatprep.subr.mxu0 0.0
    %857 = vmatpush1.msra.mxu0 0.0
    %858 = vmatprep.subr.mxu0 0.0
    %859 = vmatpush1.msra.mxu0 0.0
    %860 = vmatprep.subr.mxu0 0.0
    %861 = vmatpush1.msra.mxu0 0.0
    %862 = vmatprep.subr.mxu0 0.0
    %863 = vmatpush1.msra.mxu0 0.0
    %864 = vmatprep.subr.mxu0 0.0
    %865 = vmatpush1.msra.mxu0 %v266
    %866 = vmatprep.subr.mxu0 0.0
    %867 = vmatpush1.msra.mxu0 %v261
    %868 = vmatprep.subr.mxu0 0.0
    %869 = vmatpush2.msra.mxu0 0.0
    %870 = vmatprep.subr.mxu0 0.0
    %871 = vmatpush2.msra.mxu0 0.0
    %872 = vmatprep.subr.mxu0 0.0
    %873 = vmatpush2.msra.mxu0 0.0
    %874 = vmatprep.subr.mxu0 0.0
    %875 = vmatpush2.msra.mxu0 0.0
    %876 = vmatprep.subr.mxu0 0.0
    %877 = vmatpush2.msra.mxu0 0.0
    %878 = vmatprep.subr.mxu0 0.0
    %879 = vmatpush2.msra.mxu0 0.0
    %880 = vmatprep.subr.mxu0 0.0
    %881 = vmatpush2.msra.mxu0 0.0
    %882 = vmatprep.subr.mxu0 0.0
    %883 = vmatpush2.msra.mxu0 0.0
    %884 = vmatprep.subr.mxu0 0.0
    %885 = vmatpush2.msra.mxu0 0.0
    %886 = vmatprep.subr.mxu0 0.0
    %887 = vmatpush2.msra.mxu0 0.0
    %888 = vmatprep.subr.mxu0 0.0
    %889 = vmatpush2.msra.mxu0 0.0
    %890 = vmatprep.subr.mxu0 0.0
    %891 = vmatpush2.msra.mxu0 0.0
    %892 = vmatprep.subr.mxu0 0.0
    %893 = vmatpush2.msra.mxu0 0.0
    %894 = vmatprep.subr.mxu0 0.0
    %895 = vmatpush2.msra.mxu0 0.0
    %896 = vmatprep.subr.mxu0 0.0
    %897 = vmatpush2.msra.mxu0 0.0
    %898 = vmatprep.subr.mxu0 0.0
    %899 = vmatpush2.msra.mxu0 0.0
    %900 = vmatprep.mubr.f32.mxu0 0.0
    %901 = vmatmul.mubr.f32.gmra.mxu0 %v756
    %v902 = vpop.f32.mrf.mxu0
    %v903 = vadd.f32 0.0, %v902
    %v904 = vpop.f32.mrf.mxu0
    %905 = vmatprep.mubr.f32.mxu0 0.0
    %906 = vmatmul.mubr.f32.gmra.mxu0 %v759
    %v907 = vpop.f32.mrf.mxu0
    %v908 = vadd.f32 0.0, %v907
    %v909 = vpop.f32.mrf.mxu0
    %910 = vdwg.mxu0
    %911 = vmatprep.subr.mxu0 0.0
    %912 = vmatpush1.msra.mxu0 0.0
    %913 = vmatprep.subr.mxu0 0.0
    %914 = vmatpush1.msra.mxu0 0.0
    %915 = vmatprep.subr.mxu0 0.0
    %916 = vmatpush1.msra.mxu0 0.0
    %917 = vmatprep.subr.mxu0 0.0
    %918 = vmatpush1.msra.mxu0 0.0
    %919 = vmatprep.subr.mxu0 0.0
    %920 = vmatpush1.msra.mxu0 0.0
    %921 = vmatprep.subr.mxu0 0.0
    %922 = vmatpush1.msra.mxu0 0.0
    %923 = vmatprep.subr.mxu0 0.0
    %924 = vmatpush1.msra.mxu0 0.0
    %925 = vmatprep.subr.mxu0 0.0
    %926 = vmatpush1.msra.mxu0 0.0
    %927 = vmatprep.subr.mxu0 0.0
    %928 = vmatpush1.msra.mxu0 0.0
    %929 = vmatprep.subr.mxu0 0.0
    %930 = vmatpush1.msra.mxu0 0.0
    %931 = vmatprep.subr.mxu0 0.0
    %932 = vmatpush1.msra.mxu0 0.0
    %933 = vmatprep.subr.mxu0 0.0
    %934 = vmatpush1.msra.mxu0 0.0
    %935 = vmatprep.subr.mxu0 0.0
    %936 = vmatpush1.msra.mxu0 0.0
    %937 = vmatprep.subr.mxu0 0.0
    %938 = vmatpush1.msra.mxu0 0.0
    %939 = vmatprep.subr.mxu0 0.0
    %940 = vmatpush1.msra.mxu0 %v347
    %941 = vmatprep.subr.mxu0 0.0
    %942 = vmatpush1.msra.mxu0 %v342
    %943 = vmatprep.subr.mxu0 0.0
    %944 = vmatpush2.msra.mxu0 0.0
    %945 = vmatprep.subr.mxu0 0.0
    %946 = vmatpush2.msra.mxu0 0.0
    %947 = vmatprep.subr.mxu0 0.0
    %948 = vmatpush2.msra.mxu0 0.0
    %949 = vmatprep.subr.mxu0 0.0
    %950 = vmatpush2.msra.mxu0 0.0
    %951 = vmatprep.subr.mxu0 0.0
    %952 = vmatpush2.msra.mxu0 0.0
    %953 = vmatprep.subr.mxu0 0.0
    %954 = vmatpush2.msra.mxu0 0.0
    %955 = vmatprep.subr.mxu0 0.0
    %956 = vmatpush2.msra.mxu0 0.0
    %957 = vmatprep.subr.mxu0 0.0
    %958 = vmatpush2.msra.mxu0 0.0
    %959 = vmatprep.subr.mxu0 0.0
    %960 = vmatpush2.msra.mxu0 0.0
    %961 = vmatprep.subr.mxu0 0.0
    %962 = vmatpush2.msra.mxu0 0.0
    %963 = vmatprep.subr.mxu0 0.0
    %964 = vmatpush2.msra.mxu0 0.0
    %965 = vmatprep.subr.mxu0 0.0
    %966 = vmatpush2.msra.mxu0 0.0
    %967 = vmatprep.subr.mxu0 0.0
    %968 = vmatpush2.msra.mxu0 0.0
    %969 = vmatprep.subr.mxu0 0.0
    %970 = vmatpush2.msra.mxu0 0.0
    %971 = vmatprep.subr.mxu0 0.0
    %972 = vmatpush2.msra.mxu0 0.0
    %973 = vmatprep.subr.mxu0 0.0
    %974 = vmatpush2.msra.mxu0 0.0
    %975 = vmatprep.mubr.f32.mxu0 0.0
    %976 = vmatmul.mubr.f32.gmra.mxu0 %v756
    %v977 = vpop.f32.mrf.mxu0
    %v978 = vadd.f32 0.0, %v977
    %v979 = vpop.f32.mrf.mxu0
    %980 = vmatprep.mubr.f32.mxu0 0.0
    %981 = vmatmul.mubr.f32.gmra.mxu0 %v759
    %v982 = vpop.f32.mrf.mxu0
    %v983 = vadd.f32 0.0, %v982
    %v984 = vpop.f32.mrf.mxu0
    %985 = vdwg.mxu0
    %986 = vmatprep.subr.mxu0 0.0
    %987 = vmatpush1.msra.mxu0 0.0
    %988 = vmatprep.subr.mxu0 0.0
    %989 = vmatpush1.msra.mxu0 0.0
    %990 = vmatprep.subr.mxu0 0.0
    %991 = vmatpush1.msra.mxu0 0.0
    %992 = vmatprep.subr.mxu0 0.0
    %993 = vmatpush1.msra.mxu0 0.0
    %994 = vmatprep.subr.mxu0 0.0
    %995 = vmatpush1.msra.mxu0 0.0
    %996 = vmatprep.subr.mxu0 0.0
    %997 = vmatpush1.msra.mxu0 0.0
    %998 = vmatprep.subr.mxu0 0.0
    %999 = vmatpush1.msra.mxu0 0.0
    %1000 = vmatprep.subr.mxu0 0.0
    %1001 = vmatpush1.msra.mxu0 0.0
    %1002 = vmatprep.subr.mxu0 0.0
    %1003 = vmatpush1.msra.mxu0 0.0
    %1004 = vmatprep.subr.mxu0 0.0
    %1005 = vmatpush1.msra.mxu0 0.0
    %1006 = vmatprep.subr.mxu0 0.0
    %1007 = vmatpush1.msra.mxu0 0.0
    %1008 = vmatprep.subr.mxu0 0.0
    %1009 = vmatpush1.msra.mxu0 0.0
    %1010 = vmatprep.subr.mxu0 0.0
    %1011 = vmatpush1.msra.mxu0 0.0
    %1012 = vmatprep.subr.mxu0 0.0
    %1013 = vmatpush1.msra.mxu0 0.0
    %1014 = vmatprep.subr.mxu0 0.0
    %1015 = vmatpush1.msra.mxu0 %v428
    %1016 = vmatprep.subr.mxu0 0.0
    %1017 = vmatpush1.msra.mxu0 %v423
    %1018 = vmatprep.subr.mxu0 0.0
    %1019 = vmatpush2.msra.mxu0 0.0
    %1020 = vmatprep.subr.mxu0 0.0
    %1021 = vmatpush2.msra.mxu0 0.0
    %1022 = vmatprep.subr.mxu0 0.0
    %1023 = vmatpush2.msra.mxu0 0.0
    %1024 = vmatprep.subr.mxu0 0.0
    %1025 = vmatpush2.msra.mxu0 0.0
    %1026 = vmatprep.subr.mxu0 0.0
    %1027 = vmatpush2.msra.mxu0 0.0
    %1028 = vmatprep.subr.mxu0 0.0
    %1029 = vmatpush2.msra.mxu0 0.0
    %1030 = vmatprep.subr.mxu0 0.0
    %1031 = vmatpush2.msra.mxu0 0.0
    %1032 = vmatprep.subr.mxu0 0.0
    %1033 = vmatpush2.msra.mxu0 0.0
    %1034 = vmatprep.subr.mxu0 0.0
    %1035 = vmatpush2.msra.mxu0 0.0
    %1036 = vmatprep.subr.mxu0 0.0
    %1037 = vmatpush2.msra.mxu0 0.0
    %1038 = vmatprep.subr.mxu0 0.0
    %1039 = vmatpush2.msra.mxu0 0.0
    %1040 = vmatprep.subr.mxu0 0.0
    %1041 = vmatpush2.msra.mxu0 0.0
    %1042 = vmatprep.subr.mxu0 0.0
    %1043 = vmatpush2.msra.mxu0 0.0
    %1044 = vmatprep.subr.mxu0 0.0
    %1045 = vmatpush2.msra.mxu0 0.0
    %1046 = vmatprep.subr.mxu0 0.0
    %1047 = vmatpush2.msra.mxu0 0.0
    %1048 = vmatprep.subr.mxu0 0.0
    %1049 = vmatpush2.msra.mxu0 0.0
    %1050 = vmatprep.mubr.f32.mxu0 0.0
    %1051 = vmatmul.mubr.f32.gmra.mxu0 %v756
    %v1052 = vpop.f32.mrf.mxu0
    %v1053 = vadd.f32 0.0, %v1052
    %v1054 = vpop.f32.mrf.mxu0
    %1055 = vmatprep.mubr.f32.mxu0 0.0
    %1056 = vmatmul.mubr.f32.gmra.mxu0 %v759
    %v1057 = vpop.f32.mrf.mxu0
    %v1058 = vadd.f32 0.0, %v1057
    %v1059 = vpop.f32.mrf.mxu0
    %1060 = vdwg.mxu0
    %1061 = vmatprep.subr.mxu0 0.0
    %1062 = vmatpush1.msra.mxu0 0.0
    %1063 = vmatprep.subr.mxu0 0.0
    %1064 = vmatpush1.msra.mxu0 0.0
    %1065 = vmatprep.subr.mxu0 0.0
    %1066 = vmatpush1.msra.mxu0 0.0
    %1067 = vmatprep.subr.mxu0 0.0
    %1068 = vmatpush1.msra.mxu0 0.0
    %1069 = vmatprep.subr.mxu0 0.0
    %1070 = vmatpush1.msra.mxu0 0.0
    %1071 = vmatprep.subr.mxu0 0.0
    %1072 = vmatpush1.msra.mxu0 0.0
    %1073 = vmatprep.subr.mxu0 0.0
    %1074 = vmatpush1.msra.mxu0 0.0
    %1075 = vmatprep.subr.mxu0 0.0
    %1076 = vmatpush1.msra.mxu0 0.0
    %1077 = vmatprep.subr.mxu0 0.0
    %1078 = vmatpush1.msra.mxu0 0.0
    %1079 = vmatprep.subr.mxu0 0.0
    %1080 = vmatpush1.msra.mxu0 0.0
    %1081 = vmatprep.subr.mxu0 0.0
    %1082 = vmatpush1.msra.mxu0 0.0
    %1083 = vmatprep.subr.mxu0 0.0
    %1084 = vmatpush1.msra.mxu0 0.0
    %1085 = vmatprep.subr.mxu0 0.0
    %1086 = vmatpush1.msra.mxu0 0.0
    %1087 = vmatprep.subr.mxu0 0.0
    %1088 = vmatpush1.msra.mxu0 0.0
    %1089 = vmatprep.subr.mxu0 0.0
    %1090 = vmatpush1.msra.mxu0 %v509
    %1091 = vmatprep.subr.mxu0 0.0
    %1092 = vmatpush1.msra.mxu0 %v504
    %1093 = vmatprep.subr.mxu0 0.0
    %1094 = vmatpush2.msra.mxu0 0.0
    %1095 = vmatprep.subr.mxu0 0.0
    %1096 = vmatpush2.msra.mxu0 0.0
    %1097 = vmatprep.subr.mxu0 0.0
    %1098 = vmatpush2.msra.mxu0 0.0
    %1099 = vmatprep.subr.mxu0 0.0
    %1100 = vmatpush2.msra.mxu0 0.0
    %1101 = vmatprep.subr.mxu0 0.0
    %1102 = vmatpush2.msra.mxu0 0.0
    %1103 = vmatprep.subr.mxu0 0.0
    %1104 = vmatpush2.msra.mxu0 0.0
    %1105 = vmatprep.subr.mxu0 0.0
    %1106 = vmatpush2.msra.mxu0 0.0
    %1107 = vmatprep.subr.mxu0 0.0
    %1108 = vmatpush2.msra.mxu0 0.0
    %1109 = vmatprep.subr.mxu0 0.0
    %1110 = vmatpush2.msra.mxu0 0.0
    %1111 = vmatprep.subr.mxu0 0.0
    %1112 = vmatpush2.msra.mxu0 0.0
    %1113 = vmatprep.subr.mxu0 0.0
    %1114 = vmatpush2.msra.mxu0 0.0
    %1115 = vmatprep.subr.mxu0 0.0
    %1116 = vmatpush2.msra.mxu0 0.0
    %1117 = vmatprep.subr.mxu0 0.0
    %1118 = vmatpush2.msra.mxu0 0.0
    %1119 = vmatprep.subr.mxu0 0.0
    %1120 = vmatpush2.msra.mxu0 0.0
    %1121 = vmatprep.subr.mxu0 0.0
    %1122 = vmatpush2.msra.mxu0 0.0
    %1123 = vmatprep.subr.mxu0 0.0
    %1124 = vmatpush2.msra.mxu0 0.0
    %1125 = vmatprep.mubr.f32.mxu0 0.0
    %1126 = vmatmul.mubr.f32.gmra.mxu0 %v756
    %v1127 = vpop.f32.mrf.mxu0
    %v1128 = vadd.f32 0.0, %v1127
    %v1129 = vpop.f32.mrf.mxu0
    %1130 = vmatprep.mubr.f32.mxu0 0.0
    %1131 = vmatmul.mubr.f32.gmra.mxu0 %v759
    %v1132 = vpop.f32.mrf.mxu0
    %v1133 = vadd.f32 0.0, %v1132
    %v1134 = vpop.f32.mrf.mxu0
    %1135 = vdwg.mxu0
    %1136 = vmatprep.subr.mxu0 0.0
    %1137 = vmatpush1.msra.mxu0 0.0
    %1138 = vmatprep.subr.mxu0 0.0
    %1139 = vmatpush1.msra.mxu0 0.0
    %1140 = vmatprep.subr.mxu0 0.0
    %1141 = vmatpush1.msra.mxu0 0.0
    %1142 = vmatprep.subr.mxu0 0.0
    %1143 = vmatpush1.msra.mxu0 0.0
    %1144 = vmatprep.subr.mxu0 0.0
    %1145 = vmatpush1.msra.mxu0 0.0
    %1146 = vmatprep.subr.mxu0 0.0
    %1147 = vmatpush1.msra.mxu0 0.0
    %1148 = vmatprep.subr.mxu0 0.0
    %1149 = vmatpush1.msra.mxu0 0.0
    %1150 = vmatprep.subr.mxu0 0.0
    %1151 = vmatpush1.msra.mxu0 0.0
    %1152 = vmatprep.subr.mxu0 0.0
    %1153 = vmatpush1.msra.mxu0 0.0
    %1154 = vmatprep.subr.mxu0 0.0
    %1155 = vmatpush1.msra.mxu0 0.0
    %1156 = vmatprep.subr.mxu0 0.0
    %1157 = vmatpush1.msra.mxu0 0.0
    %1158 = vmatprep.subr.mxu0 0.0
    %1159 = vmatpush1.msra.mxu0 0.0
    %1160 = vmatprep.subr.mxu0 0.0
    %1161 = vmatpush1.msra.mxu0 0.0
    %1162 = vmatprep.subr.mxu0 0.0
    %1163 = vmatpush1.msra.mxu0 0.0
    %1164 = vmatprep.subr.mxu0 0.0
    %1165 = vmatpush1.msra.mxu0 %v590
    %1166 = vmatprep.subr.mxu0 0.0
    %1167 = vmatpush1.msra.mxu0 %v585
    %1168 = vmatprep.subr.mxu0 0.0
    %1169 = vmatpush2.msra.mxu0 0.0
    %1170 = vmatprep.subr.mxu0 0.0
    %1171 = vmatpush2.msra.mxu0 0.0
    %1172 = vmatprep.subr.mxu0 0.0
    %1173 = vmatpush2.msra.mxu0 0.0
    %1174 = vmatprep.subr.mxu0 0.0
    %1175 = vmatpush2.msra.mxu0 0.0
    %1176 = vmatprep.subr.mxu0 0.0
    %1177 = vmatpush2.msra.mxu0 0.0
    %1178 = vmatprep.subr.mxu0 0.0
    %1179 = vmatpush2.msra.mxu0 0.0
    %1180 = vmatprep.subr.mxu0 0.0
    %1181 = vmatpush2.msra.mxu0 0.0
    %1182 = vmatprep.subr.mxu0 0.0
    %1183 = vmatpush2.msra.mxu0 0.0
    %1184 = vmatprep.subr.mxu0 0.0
    %1185 = vmatpush2.msra.mxu0 0.0
    %1186 = vmatprep.subr.mxu0 0.0
    %1187 = vmatpush2.msra.mxu0 0.0
    %1188 = vmatprep.subr.mxu0 0.0
    %1189 = vmatpush2.msra.mxu0 0.0
    %1190 = vmatprep.subr.mxu0 0.0
    %1191 = vmatpush2.msra.mxu0 0.0
    %1192 = vmatprep.subr.mxu0 0.0
    %1193 = vmatpush2.msra.mxu0 0.0
    %1194 = vmatprep.subr.mxu0 0.0
    %1195 = vmatpush2.msra.mxu0 0.0
    %1196 = vmatprep.subr.mxu0 0.0
    %1197 = vmatpush2.msra.mxu0 0.0
    %1198 = vmatprep.subr.mxu0 0.0
    %1199 = vmatpush2.msra.mxu0 0.0
    %1200 = vmatprep.mubr.f32.mxu0 0.0
    %1201 = vmatmul.mubr.f32.gmra.mxu0 %v756
    %v1202 = vpop.f32.mrf.mxu0
    %v1203 = vadd.f32 0.0, %v1202
    %v1204 = vpop.f32.mrf.mxu0
    %1205 = vmatprep.mubr.f32.mxu0 0.0
    %1206 = vmatmul.mubr.f32.gmra.mxu0 %v759
    %v1207 = vpop.f32.mrf.mxu0
    %v1208 = vadd.f32 0.0, %v1207
    %v1209 = vpop.f32.mrf.mxu0
    %1210 = vdwg.mxu0
    %1211 = vmatprep.subr.mxu0 0.0
    %1212 = vmatpush1.msra.mxu0 0.0
    %1213 = vmatprep.subr.mxu0 0.0
    %1214 = vmatpush1.msra.mxu0 0.0
    %1215 = vmatprep.subr.mxu0 0.0
    %1216 = vmatpush1.msra.mxu0 0.0
    %1217 = vmatprep.subr.mxu0 0.0
    %1218 = vmatpush1.msra.mxu0 0.0
    %1219 = vmatprep.subr.mxu0 0.0
    %1220 = vmatpush1.msra.mxu0 0.0
    %1221 = vmatprep.subr.mxu0 0.0
    %1222 = vmatpush1.msra.mxu0 0.0
    %1223 = vmatprep.subr.mxu0 0.0
    %1224 = vmatpush1.msra.mxu0 0.0
    %1225 = vmatprep.subr.mxu0 0.0
    %1226 = vmatpush1.msra.mxu0 0.0
    %1227 = vmatprep.subr.mxu0 0.0
    %1228 = vmatpush1.msra.mxu0 0.0
    %1229 = vmatprep.subr.mxu0 0.0
    %1230 = vmatpush1.msra.mxu0 0.0
    %1231 = vmatprep.subr.mxu0 0.0
    %1232 = vmatpush1.msra.mxu0 0.0
    %1233 = vmatprep.subr.mxu0 0.0
    %1234 = vmatpush1.msra.mxu0 0.0
    %1235 = vmatprep.subr.mxu0 0.0
    %1236 = vmatpush1.msra.mxu0 0.0
    %1237 = vmatprep.subr.mxu0 0.0
    %1238 = vmatpush1.msra.mxu0 0.0
    %1239 = vmatprep.subr.mxu0 0.0
    %1240 = vmatpush1.msra.mxu0 %v671
    %1241 = vmatprep.subr.mxu0 0.0
    %1242 = vmatpush1.msra.mxu0 %v666
    %1243 = vmatprep.subr.mxu0 0.0
    %1244 = vmatpush2.msra.mxu0 0.0
    %1245 = vmatprep.subr.mxu0 0.0
    %1246 = vmatpush2.msra.mxu0 0.0
    %1247 = vmatprep.subr.mxu0 0.0
    %1248 = vmatpush2.msra.mxu0 0.0
    %1249 = vmatprep.subr.mxu0 0.0
    %1250 = vmatpush2.msra.mxu0 0.0
    %1251 = vmatprep.subr.mxu0 0.0
    %1252 = vmatpush2.msra.mxu0 0.0
    %1253 = vmatprep.subr.mxu0 0.0
    %1254 = vmatpush2.msra.mxu0 0.0
    %1255 = vmatprep.subr.mxu0 0.0
    %1256 = vmatpush2.msra.mxu0 0.0
    %1257 = vmatprep.subr.mxu0 0.0
    %1258 = vmatpush2.msra.mxu0 0.0
    %1259 = vmatprep.subr.mxu0 0.0
    %1260 = vmatpush2.msra.mxu0 0.0
    %1261 = vmatprep.subr.mxu0 0.0
    %1262 = vmatpush2.msra.mxu0 0.0
    %1263 = vmatprep.subr.mxu0 0.0
    %1264 = vmatpush2.msra.mxu0 0.0
    %1265 = vmatprep.subr.mxu0 0.0
    %1266 = vmatpush2.msra.mxu0 0.0
    %1267 = vmatprep.subr.mxu0 0.0
    %1268 = vmatpush2.msra.mxu0 0.0
    %1269 = vmatprep.subr.mxu0 0.0
    %1270 = vmatpush2.msra.mxu0 0.0
    %1271 = vmatprep.subr.mxu0 0.0
    %1272 = vmatpush2.msra.mxu0 0.0
    %1273 = vmatprep.subr.mxu0 0.0
    %1274 = vmatpush2.msra.mxu0 0.0
    %1275 = vmatprep.mubr.f32.mxu0 0.0
    %1276 = vmatmul.mubr.f32.gmra.mxu0 %v756
    %v1277 = vpop.f32.mrf.mxu0
    %v1278 = vadd.f32 0.0, %v1277
    %v1279 = vpop.f32.mrf.mxu0
    %1280 = vmatprep.mubr.f32.mxu0 0.0
    %1281 = vmatmul.mubr.f32.gmra.mxu0 %v759
    %v1282 = vpop.f32.mrf.mxu0
    %v1283 = vadd.f32 0.0, %v1282
    %v1284 = vpop.f32.mrf.mxu0
    %1285 = vdwg.mxu0
    %1286 = vmatprep.subr.mxu0 0.0
    %1287 = vmatpush1.msra.mxu0 0.0
    %1288 = vmatprep.subr.mxu0 0.0
    %1289 = vmatpush1.msra.mxu0 0.0
    %1290 = vmatprep.subr.mxu0 0.0
    %1291 = vmatpush1.msra.mxu0 0.0
    %1292 = vmatprep.subr.mxu0 0.0
    %1293 = vmatpush1.msra.mxu0 0.0
    %1294 = vmatprep.subr.mxu0 0.0
    %1295 = vmatpush1.msra.mxu0 0.0
    %1296 = vmatprep.subr.mxu0 0.0
    %1297 = vmatpush1.msra.mxu0 0.0
    %1298 = vmatprep.subr.mxu0 0.0
    %1299 = vmatpush1.msra.mxu0 0.0
    %1300 = vmatprep.subr.mxu0 0.0
    %1301 = vmatpush1.msra.mxu0 0.0
    %1302 = vmatprep.subr.mxu0 0.0
    %1303 = vmatpush1.msra.mxu0 0.0
    %1304 = vmatprep.subr.mxu0 0.0
    %1305 = vmatpush1.msra.mxu0 0.0
    %1306 = vmatprep.subr.mxu0 0.0
    %1307 = vmatpush1.msra.mxu0 0.0
    %1308 = vmatprep.subr.mxu0 0.0
    %1309 = vmatpush1.msra.mxu0 0.0
    %1310 = vmatprep.subr.mxu0 0.0
    %1311 = vmatpush1.msra.mxu0 0.0
    %1312 = vmatprep.subr.mxu0 0.0
    %1313 = vmatpush1.msra.mxu0 0.0
    %1314 = vmatprep.subr.mxu0 0.0
    %1315 = vmatpush1.msra.mxu0 %v752
    %1316 = vmatprep.subr.mxu0 0.0
    %1317 = vmatpush1.msra.mxu0 %v747
    %1318 = vmatprep.subr.mxu0 0.0
    %1319 = vmatpush2.msra.mxu0 0.0
    %1320 = vmatprep.subr.mxu0 0.0
    %1321 = vmatpush2.msra.mxu0 0.0
    %1322 = vmatprep.subr.mxu0 0.0
    %1323 = vmatpush2.msra.mxu0 0.0
    %1324 = vmatprep.subr.mxu0 0.0
    %1325 = vmatpush2.msra.mxu0 0.0
    %1326 = vmatprep.subr.mxu0 0.0
    %1327 = vmatpush2.msra.mxu0 0.0
    %1328 = vmatprep.subr.mxu0 0.0
    %1329 = vmatpush2.msra.mxu0 0.0
    %1330 = vmatprep.subr.mxu0 0.0
    %1331 = vmatpush2.msra.mxu0 0.0
    %1332 = vmatprep.subr.mxu0 0.0
    %1333 = vmatpush2.msra.mxu0 0.0
    %1334 = vmatprep.subr.mxu0 0.0
    %1335 = vmatpush2.msra.mxu0 0.0
    %1336 = vmatprep.subr.mxu0 0.0
    %1337 = vmatpush2.msra.mxu0 0.0
    %1338 = vmatprep.subr.mxu0 0.0
    %1339 = vmatpush2.msra.mxu0 0.0
    %1340 = vmatprep.subr.mxu0 0.0
    %1341 = vmatpush2.msra.mxu0 0.0
    %1342 = vmatprep.subr.mxu0 0.0
    %1343 = vmatpush2.msra.mxu0 0.0
    %1344 = vmatprep.subr.mxu0 0.0
    %1345 = vmatpush2.msra.mxu0 0.0
    %1346 = vmatprep.subr.mxu0 0.0
    %1347 = vmatpush2.msra.mxu0 0.0
    %1348 = vmatprep.subr.mxu0 0.0
    %1349 = vmatpush2.msra.mxu0 0.0
    %1350 = vmatprep.mubr.f32.mxu0 0.0
    %1351 = vmatmul.mubr.f32.gmra.mxu0 %v756
    %v1352 = vpop.f32.mrf.mxu0
    %v1353 = vadd.f32 0.0, %v1352
    %v1354 = vpop.f32.mrf.mxu0
    %1355 = vmatprep.mubr.f32.mxu0 0.0
    %1356 = vmatmul.mubr.f32.gmra.mxu0 %v759
    %v1357 = vpop.f32.mrf.mxu0
    %v1358 = vadd.f32 0.0, %v1357
    %v1359 = vpop.f32.mrf.mxu0
    %1360 = vdwg.mxu0
    %vm1361 = vcmp.lt.f32.partialorder %v828, 0.5
    %vm1362 = vcmp.lt.f32.partialorder %v833, 0.5
    %vm1363 = vcmp.lt.f32.partialorder %v903, 0.5
    %vm1364 = vcmp.lt.f32.partialorder %v908, 0.5
    %vm1365 = vcmp.lt.f32.partialorder %v978, 0.5
    %vm1366 = vcmp.lt.f32.partialorder %v983, 0.5
    %vm1367 = vcmp.lt.f32.partialorder %v1053, 0.5
    %vm1368 = vcmp.lt.f32.partialorder %v1058, 0.5
    %vm1369 = vcmp.lt.f32.partialorder %v1128, 0.5
    %vm1370 = vcmp.lt.f32.partialorder %v1133, 0.5
    %vm1371 = vcmp.lt.f32.partialorder %v1203, 0.5
    %vm1372 = vcmp.lt.f32.partialorder %v1208, 0.5
    %vm1373 = vcmp.lt.f32.partialorder %v1278, 0.5
    %vm1374 = vcmp.lt.f32.partialorder %v1283, 0.5
    %vm1375 = vcmp.lt.f32.partialorder %v1353, 0.5
    %vm1376 = vcmp.lt.f32.partialorder %v1358, 0.5
    %v1377 = vsel %vm1361, 1, 0
    %v1378 = vsel %vm1362, 1, 0
    %v1379 = vsel %vm1363, 1, 0
    %v1380 = vsel %vm1364, 1, 0
    %v1381 = vsel %vm1365, 1, 0
    %v1382 = vsel %vm1366, 1, 0
    %v1383 = vsel %vm1367, 1, 0
    %v1384 = vsel %vm1368, 1, 0
    %v1385 = vsel %vm1369, 1, 0
    %v1386 = vsel %vm1370, 1, 0
    %v1387 = vsel %vm1371, 1, 0
    %v1388 = vsel %vm1372, 1, 0
    %v1389 = vsel %vm1373, 1, 0
    %v1390 = vsel %vm1374, 1, 0
    %v1391 = vsel %vm1375, 1, 0
    %v1392 = vsel %vm1376, 1, 0
    %v1393 = vcvt.s32.f32 %v1377
    %v1394 = vcvt.s32.f32 %v1378
    %v1395 = vcvt.s32.f32 %v1379
    %v1396 = vcvt.s32.f32 %v1380
    %v1397 = vcvt.s32.f32 %v1381
    %v1398 = vcvt.s32.f32 %v1382
    %v1399 = vcvt.s32.f32 %v1383
    %v1400 = vcvt.s32.f32 %v1384
    %v1401 = vcvt.s32.f32 %v1385
    %v1402 = vcvt.s32.f32 %v1386
    %v1403 = vcvt.s32.f32 %v1387
    %v1404 = vcvt.s32.f32 %v1388
    %v1405 = vcvt.s32.f32 %v1389
    %v1406 = vcvt.s32.f32 %v1390
    %v1407 = vcvt.s32.f32 %v1391
    %v1408 = vcvt.s32.f32 %v1392
    %v1409 = vsel %vm106, %v1393, 0.0
    %v1410 = vsel %vm106, %v1394, 0.0
    %v1411 = vadd.f32 %v1409, %v1410
    %v1412 = vsel %vm106, %v1395, 0.0
    %v1413 = vadd.f32 %v1411, %v1412
    %v1414 = vsel %vm106, %v1396, 0.0
    %v1415 = vadd.f32 %v1413, %v1414
    %v1416 = vsel %vm106, %v1397, 0.0
    %v1417 = vadd.f32 %v1415, %v1416
    %v1418 = vsel %vm106, %v1398, 0.0
    %v1419 = vadd.f32 %v1417, %v1418
    %v1420 = vsel %vm106, %v1399, 0.0
    %v1421 = vadd.f32 %v1419, %v1420
    %v1422 = vsel %vm106, %v1400, 0.0
    %v1423 = vadd.f32 %v1421, %v1422
    %v1424 = vsel %vm106, %v1401, 0.0
    %v1425 = vadd.f32 %v1423, %v1424
    %v1426 = vsel %vm106, %v1402, 0.0
    %v1427 = vadd.f32 %v1425, %v1426
    %v1428 = vsel %vm106, %v1403, 0.0
    %v1429 = vadd.f32 %v1427, %v1428
    %v1430 = vsel %vm106, %v1404, 0.0
    %v1431 = vadd.f32 %v1429, %v1430
    %v1432 = vsel %vm106, %v1405, 0.0
    %v1433 = vadd.f32 %v1431, %v1432
    %v1434 = vsel %vm106, %v1406, 0.0
    %v1435 = vadd.f32 %v1433, %v1434
    %v1436 = vsel %vm106, %v1407, 0.0
    %v1437 = vadd.f32 %v1435, %v1436
    %v1438 = vsel %vm106, %v1408, 0.0
    %v1439 = vadd.f32 %v1437, %v1438
    %1440 = vadd.xlane.f32.xlu0 %v1439
    %v1441 = vpop.xlane.xlu0 %1440
    %v1442 = vrot.slane %v1441, 4
    %v1443 = vadd.f32 %v1441, %v1442
    %v1444 = vrot.slane %v1443, 2
    %v1445 = vadd.f32 %v1443, %v1444
    %v1446 = vrot.slane %v1445, 1
    %v1447 = vadd.f32 %v1445, %v1446
    %s1448 = vtos %v1447
    %v1449 = vstv %s1448
    %vm1450 = vcmask 0
    %1451 = vst.msk [vmem:[#allocation5] sm:$0x1] %vm1450, %v1449
    // Predicated region
    $region10: #{tpu_custom_call.1} parent=1 // pred_check
      _
    $region11: #{tpu_custom_call.1} parent=1 // pred_check_branch
      %1453 = sbr.rel (0) target = $region13
    $region12: #{tpu_custom_call.1} parent=1 // pred_region
      %s1455 = ssub.s32 16, 16
      %1456 = vsyncadd [#allocation4], %s1455
      %s1458 = sshll.u32 [#allocation5], 4
      %s1459 = int_to_ptr.vmem [resolvable:$true] %s1458
      %1461 = dma.vmem_to_hbm [thread:$0]  %s1459, 16, %s1, [#allocation4]
    $region13: #{tpu_custom_call.1} parent=1 // pred_fallthru
      _
    // Predicated region
    $region14: #{tpu_custom_call.1} parent=1 // pred_check
      _
    $region15: #{tpu_custom_call.1} parent=1 // pred_check_branch
      %1463 = sbr.rel (0) target = $region17
    $region16: #{tpu_custom_call.1} parent=1 // pred_region
      %1464 = dma.done [#allocation4], 16
    $region17: #{tpu_custom_call.1} parent=1 // pred_fallthru
      _
    %1465 = vsyncpa [#allocation3], 1
    %1466 = vsyncpa [#allocation4], 1

</llo_original>
